<compile_context>
chip_gen: v7x
topology: tpu7x:2x2x1
jax: 0.10.0
libtpu: 0.0.40
codegen_flags: <defaults>
</compile_context>

<pallas_src>
import functools
import math

import jax
import jax.numpy as jnp
from jax.experimental import pallas as pl
from jax.experimental.pallas import tpu as pltpu


def _attention_unify_kernel(b_ref, w_ref, x_ref, o_ref, *, r, e, s):
    # b_ref: SMEM (r,) f32
    # w_ref: VMEM (1, s*r*e)   weights tiled s times (VMEM-resident across the grid)
    # x_ref: VMEM (tm, s*r*e)  s original rows packed per slab row
    # o_ref: VMEM (tm, s*e)    packed, lane-dense output slab
    f32 = jnp.float32

    # One full-lane-width multiply for the score pass; the small segmented lane
    # sums below are XLU work that hides under the HBM-bound DMA.
    prod = x_ref[...].astype(f32) * w_ref[...].astype(f32)            # (tm, s*r*e)

    outs = []
    for si in range(s):
        base = si * r * e
        # raw scores: att[n, ri] = biases[ri] * sum_i weights[ri, i] * x[n, ri, i]
        scores = [
            jnp.sum(prod[:, base + ri * e: base + (ri + 1) * e],
                    axis=-1, keepdims=True) * b_ref[ri]               # (tm, 1)
            for ri in range(r)
        ]

        # Softmax over the tiny relation axis, kept as r column vectors
        # (pure VPU/EUP, no lane concatenation, no MXU).
        m = scores[0]
        for ri in range(1, r):
            m = jnp.maximum(m, scores[ri])
        exps = [jnp.exp(sc - m) for sc in scores]
        denom = exps[0]
        for ri in range(1, r):
            denom = denom + exps[ri]
        inv = 1.0 / denom          # exact divide: softmax weights sum to exactly 1

        # out[n, :] = sum_r softmax_r[n] * x[n, r, :]  (broadcast-mul + add on VPU).
        # x chunks are re-read from VMEM (cheap vld) instead of kept live in vregs.
        acc = (exps[0] * inv) * x_ref[:, pl.ds(base, e)].astype(f32)
        for ri in range(1, r):
            acc = acc + (exps[ri] * inv) * x_ref[:, pl.ds(base + ri * e, e)].astype(f32)
        outs.append(acc)                                              # (tm, e)

    packed = outs[0] if s == 1 else jnp.concatenate(outs, axis=-1)    # (tm, s*e)
    o_ref[...] = packed.astype(o_ref.dtype)


def _round_up(a, m):
    return ((a + m - 1) // m) * m


def _physical_vmem_bytes():
    try:
        info = pltpu.get_tpu_info()
        v = int(getattr(info, "vmem_capacity_bytes", 0))
        if v > 0:
            return v
    except Exception:
        pass
    return 64 << 20  # conservative default: v7x per-TensorCore VMEM


def _plan_tiles(n, r, e, s, itemsize):
    """Return (tm, n_slab_pad, vmem_limit_bytes).

    tm = slab rows per grid step (each slab row packs `s` original rows), sized for
    multi-MiB x tiles (bandwidth-bound), bounded by a per-generation VMEM budget
    (bf16-honest itemsize for the pipelined tiles, f32 intermediates budgeted
    separately), and giving >= 2 grid steps so v7x's two TensorCores both get work.
    """
    phys = _physical_vmem_bytes()
    # Explicit scoped-VMEM limit: ~3/4 of physical, always leaving >=16 MiB headroom
    # (v5e/v6e 128 MiB -> 96 MiB; v7x 64 MiB -> 48 MiB).
    vmem_limit = max(32 << 20, min(phys - (16 << 20), (phys * 3) // 4))

    in_w, out_w = s * r * e, s * e
    # Per slab-row footprint: double-buffered x/out tiles at TRUE itemsize plus
    # ~3 tile-sized f32 intermediates (prod / upcast chunks / acc).
    per_row = 2 * (in_w + out_w) * itemsize + 3 * in_w * 4
    cap_budget = (vmem_limit * 3 // 5) // max(per_row, 1)
    cap_target = (8 << 20) // max(in_w * itemsize, 1)      # ~8 MiB x tile per buffer
    tm_cap = max(8, (min(cap_budget, cap_target) // 8) * 8)

    n_slab = -(-n // s)                                     # cdiv
    if n_slab > 8:
        # At least 2 grid steps (megacore sharding on v7x; harmless on v5e/v6e).
        tm = min(tm_cap, _round_up(-(-n_slab // 2), 8))
    else:
        tm = 8
    n_slab_pad = _round_up(max(n_slab, 1), tm)
    return tm, n_slab_pad, vmem_limit


def attention_unify(x, weights, biases):
    """x: (n, r, e); weights: (r, e); biases: (r,)  ->  (n, e)."""
    n, r, e = x.shape
    assert weights.shape == (r, e)
    assert biases.shape == (r,)

    # Rows packed per slab row so the output slab is lane-dense.
    if e % 128 == 0:
        s = 1                       # output already lane-dense
    elif 128 % e == 0:
        s = 128 // e                # e.g. e=32 -> 4 rows per 128-lane slab row
    else:
        s = 1                       # TODO(synk): lane-sparse output for e not dividing 128

    itemsize = jnp.dtype(x.dtype).itemsize
    tm, n_slab_pad, vmem_limit = _plan_tiles(n, r, e, s, itemsize)
    n_pad = n_slab_pad * s

    # Zero-pad ragged n (padded rows give uniform softmax over zeros -> zero output).
    if n_pad != n:
        x = jnp.pad(x, ((0, n_pad - n), (0, 0), (0, 0)))

    # Free, contiguous reshapes: lane-dense slab layout for the memory-bound DMA.
    x_slab = x.reshape(n_slab_pad, s * r * e)
    w_slab = jnp.tile(weights.reshape(1, r * e), (1, s))
    b = biases.astype(jnp.float32)

    kernel = functools.partial(_attention_unify_kernel, r=r, e=e, s=s)

    out_packed = pl.pallas_call(
        kernel,
        out_shape=jax.ShapeDtypeStruct((n_slab_pad, s * e), x.dtype),
        grid_spec=pltpu.PrefetchScalarGridSpec(
            num_scalar_prefetch=0,
            grid=(n_slab_pad // tm,),
            in_specs=[
                # r scalar biases: SMEM, scalar-path reads.
                pl.BlockSpec(memory_space=pltpu.MemorySpace.SMEM),
                # weights resident in VMEM across the whole grid.
                pl.BlockSpec((1, s * r * e), lambda i: (0, 0)),
                # x tiled over slab rows, lane-dense last dim.
                pl.BlockSpec((tm, s * r * e), lambda i: (i, 0)),
            ],
            out_specs=pl.BlockSpec((tm, s * e), lambda i: (i, 0)),
        ),
        compiler_params=pltpu.CompilerParams(
            dimension_semantics=("parallel",),
            vmem_limit_bytes=int(vmem_limit),
        ),
    )(b, w_slab, x_slab)

    out = out_packed.reshape(n_pad, e)      # free, contiguous un-pack
    return out[:n] if n_pad != n else out


def attention_unify_ref(x, weights, biases):
    att = jnp.einsum('ri,nri->nr', weights, x)
    att = att * biases[None, :]
    att = jax.nn.softmax(att, axis=1)
    return jnp.einsum('nr,nri->ni', att, x)


if __name__ == "__main__":
    key = jax.random.PRNGKey(0)

    def run_case(n, r, e, kseed):
        kx, kw, kb = jax.random.split(kseed, 3)
        x = jax.random.normal(kx, (n, r, e), dtype=jnp.float32)
        # Parameter init per __init__: weights (r, e) ~ U(-sqrt(e), sqrt(e)).
        bound = math.sqrt(e)
        weights = jax.random.uniform(kw, (r, e), dtype=jnp.float32,
                                     minval=-bound, maxval=bound)
        # The module inits biases to zeros (softmax degenerates to uniform); use small
        # deterministic nonzero biases to exercise the full score/softmax path.
        biases = 0.1 * jax.random.normal(kb, (r,), dtype=jnp.float32)

        out = jax.block_until_ready(attention_unify(x, weights, biases))
        ref = attention_unify_ref(x, weights, biases)
        assert out.shape == (n, e)
        assert jnp.allclose(out, ref, atol=1e-4, rtol=1e-4), f"mismatch n={n} r={r} e={e}"

    k1, k2, k3 = jax.random.split(key, 3)
    run_case(32, 4, 32, k1)   # packed lane-dense output (s=4), single tile
    run_case(37, 4, 32, k2)   # ragged n -> zero-padded, 2 grid steps
    run_case(19, 3, 48, k3)   # e does not divide 128 -> s=1 fallback path

    print("KERNEL_OK")
</pallas_src>

<mosaic_0001>
module attributes {stable_mosaic.version = 11 : i64} {
  func.func @_attention_unify_kernel(%arg0: i32, %arg1: memref<4xf32, #tpu.memory_space<smem>>, %arg2: memref<1x512xf32, #tpu.memory_space<vmem>>, %arg3: memref<8x512xf32, #tpu.memory_space<vmem>>, %arg4: memref<8x128xf32, #tpu.memory_space<vmem>>) attributes {dimension_semantics = [#tpu.dimension_semantics<parallel>], iteration_bounds = array<i64: 1>, scalar_prefetch = 0 : i64, scratch_operands = 0 : i64, tpu.core_type = #tpu.core_type<tc>, window_params = [{transform_indices = @transform_0, window_bounds = array<i64: 4>}, {pipeline_mode = #tpu.pipeline_mode<synchronous>, transform_indices = @transform_1, window_bounds = array<i64: 1, 512>}, {transform_indices = @transform_2, window_bounds = array<i64: 8, 512>}, {transform_indices = @transform_3, window_bounds = array<i64: 8, 128>}]} {
    %c0 = arith.constant 0 : index
    %c0_0 = arith.constant 0 : index
    %0 = vector.load %arg3[%c0, %c0_0] : memref<8x512xf32, #tpu.memory_space<vmem>>, vector<8x512xf32>
    %c0_1 = arith.constant 0 : index
    %c0_2 = arith.constant 0 : index
    %1 = vector.load %arg2[%c0_1, %c0_2] : memref<1x512xf32, #tpu.memory_space<vmem>>, vector<1x512xf32>
    %2 = vector.broadcast %1 : vector<1x512xf32> to vector<8x512xf32>
    %3 = arith.mulf %0, %2 : vector<8x512xf32>
    %4 = vector.extract_strided_slice %3 {offsets = [0, 0], sizes = [8, 32], strides = [1, 1]} : vector<8x512xf32> to vector<8x32xf32>
    %cst = arith.constant dense<0.000000e+00> : vector<8xf32>
    %5 = vector.multi_reduction <add>, %4, %cst [1] : vector<8x32xf32> to vector<8xf32>
    %6 = vector.shape_cast %5 : vector<8xf32> to vector<8x1xf32>
    %c0_3 = arith.constant 0 : index
    %7 = memref.load %arg1[%c0_3] : memref<4xf32, #tpu.memory_space<smem>>
    %8 = vector.broadcast %7 : f32 to vector<8x1xf32>
    %9 = arith.mulf %6, %8 : vector<8x1xf32>
    %10 = vector.extract_strided_slice %3 {offsets = [0, 32], sizes = [8, 32], strides = [1, 1]} : vector<8x512xf32> to vector<8x32xf32>
    %cst_4 = arith.constant dense<0.000000e+00> : vector<8xf32>
    %11 = vector.multi_reduction <add>, %10, %cst_4 [1] : vector<8x32xf32> to vector<8xf32>
    %12 = vector.shape_cast %11 : vector<8xf32> to vector<8x1xf32>
    %c1 = arith.constant 1 : index
    %13 = memref.load %arg1[%c1] : memref<4xf32, #tpu.memory_space<smem>>
    %14 = vector.broadcast %13 : f32 to vector<8x1xf32>
    %15 = arith.mulf %12, %14 : vector<8x1xf32>
    %16 = vector.extract_strided_slice %3 {offsets = [0, 64], sizes = [8, 32], strides = [1, 1]} : vector<8x512xf32> to vector<8x32xf32>
    %cst_5 = arith.constant dense<0.000000e+00> : vector<8xf32>
    %17 = vector.multi_reduction <add>, %16, %cst_5 [1] : vector<8x32xf32> to vector<8xf32>
    %18 = vector.shape_cast %17 : vector<8xf32> to vector<8x1xf32>
    %c2 = arith.constant 2 : index
    %19 = memref.load %arg1[%c2] : memref<4xf32, #tpu.memory_space<smem>>
    %20 = vector.broadcast %19 : f32 to vector<8x1xf32>
    %21 = arith.mulf %18, %20 : vector<8x1xf32>
    %22 = vector.extract_strided_slice %3 {offsets = [0, 96], sizes = [8, 32], strides = [1, 1]} : vector<8x512xf32> to vector<8x32xf32>
    %cst_6 = arith.constant dense<0.000000e+00> : vector<8xf32>
    %23 = vector.multi_reduction <add>, %22, %cst_6 [1] : vector<8x32xf32> to vector<8xf32>
    %24 = vector.shape_cast %23 : vector<8xf32> to vector<8x1xf32>
    %c3 = arith.constant 3 : index
    %25 = memref.load %arg1[%c3] : memref<4xf32, #tpu.memory_space<smem>>
    %26 = vector.broadcast %25 : f32 to vector<8x1xf32>
    %27 = arith.mulf %24, %26 : vector<8x1xf32>
    %28 = arith.maximumf %9, %15 : vector<8x1xf32>
    %29 = arith.maximumf %28, %21 : vector<8x1xf32>
    %30 = arith.maximumf %29, %27 : vector<8x1xf32>
    %31 = arith.subf %9, %30 : vector<8x1xf32>
    %32 = math.exp %31 : vector<8x1xf32>
    %33 = arith.subf %15, %30 : vector<8x1xf32>
    %34 = math.exp %33 : vector<8x1xf32>
    %35 = arith.subf %21, %30 : vector<8x1xf32>
    %36 = math.exp %35 : vector<8x1xf32>
    %37 = arith.subf %27, %30 : vector<8x1xf32>
    %38 = math.exp %37 : vector<8x1xf32>
    %39 = arith.addf %32, %34 : vector<8x1xf32>
    %40 = arith.addf %39, %36 : vector<8x1xf32>
    %41 = arith.addf %40, %38 : vector<8x1xf32>
    %cst_7 = arith.constant 1.000000e+00 : f32
    %42 = vector.broadcast %cst_7 : f32 to vector<8x1xf32>
    %43 = arith.divf %42, %41 : vector<8x1xf32>
    %44 = arith.mulf %32, %43 : vector<8x1xf32>
    %c0_8 = arith.constant 0 : index
    %c0_9 = arith.constant 0 : index
    %45 = vector.load %arg3[%c0_8, %c0_9] : memref<8x512xf32, #tpu.memory_space<vmem>>, vector<8x32xf32>
    %46 = vector.broadcast %44 : vector<8x1xf32> to vector<8x32xf32>
    %47 = arith.mulf %46, %45 : vector<8x32xf32>
    %48 = arith.mulf %34, %43 : vector<8x1xf32>
    %c0_10 = arith.constant 0 : index
    %c32 = arith.constant 32 : index
    %49 = vector.load %arg3[%c0_10, %c32] : memref<8x512xf32, #tpu.memory_space<vmem>>, vector<8x32xf32>
    %50 = vector.broadcast %48 : vector<8x1xf32> to vector<8x32xf32>
    %51 = arith.mulf %50, %49 : vector<8x32xf32>
    %52 = arith.addf %47, %51 : vector<8x32xf32>
    %53 = arith.mulf %36, %43 : vector<8x1xf32>
    %c0_11 = arith.constant 0 : index
    %c64 = arith.constant 64 : index
    %54 = vector.load %arg3[%c0_11, %c64] : memref<8x512xf32, #tpu.memory_space<vmem>>, vector<8x32xf32>
    %55 = vector.broadcast %53 : vector<8x1xf32> to vector<8x32xf32>
    %56 = arith.mulf %55, %54 : vector<8x32xf32>
    %57 = arith.addf %52, %56 : vector<8x32xf32>
    %58 = arith.mulf %38, %43 : vector<8x1xf32>
    %c0_12 = arith.constant 0 : index
    %c96 = arith.constant 96 : index
    %59 = vector.load %arg3[%c0_12, %c96] : memref<8x512xf32, #tpu.memory_space<vmem>>, vector<8x32xf32>
    %60 = vector.broadcast %58 : vector<8x1xf32> to vector<8x32xf32>
    %61 = arith.mulf %60, %59 : vector<8x32xf32>
    %62 = arith.addf %57, %61 : vector<8x32xf32>
    %63 = vector.extract_strided_slice %3 {offsets = [0, 128], sizes = [8, 32], strides = [1, 1]} : vector<8x512xf32> to vector<8x32xf32>
    %cst_13 = arith.constant dense<0.000000e+00> : vector<8xf32>
    %64 = vector.multi_reduction <add>, %63, %cst_13 [1] : vector<8x32xf32> to vector<8xf32>
    %65 = vector.shape_cast %64 : vector<8xf32> to vector<8x1xf32>
    %c0_14 = arith.constant 0 : index
    %66 = memref.load %arg1[%c0_14] : memref<4xf32, #tpu.memory_space<smem>>
    %67 = vector.broadcast %66 : f32 to vector<8x1xf32>
    %68 = arith.mulf %65, %67 : vector<8x1xf32>
    %69 = vector.extract_strided_slice %3 {offsets = [0, 160], sizes = [8, 32], strides = [1, 1]} : vector<8x512xf32> to vector<8x32xf32>
    %cst_15 = arith.constant dense<0.000000e+00> : vector<8xf32>
    %70 = vector.multi_reduction <add>, %69, %cst_15 [1] : vector<8x32xf32> to vector<8xf32>
    %71 = vector.shape_cast %70 : vector<8xf32> to vector<8x1xf32>
    %c1_16 = arith.constant 1 : index
    %72 = memref.load %arg1[%c1_16] : memref<4xf32, #tpu.memory_space<smem>>
    %73 = vector.broadcast %72 : f32 to vector<8x1xf32>
    %74 = arith.mulf %71, %73 : vector<8x1xf32>
    %75 = vector.extract_strided_slice %3 {offsets = [0, 192], sizes = [8, 32], strides = [1, 1]} : vector<8x512xf32> to vector<8x32xf32>
    %cst_17 = arith.constant dense<0.000000e+00> : vector<8xf32>
    %76 = vector.multi_reduction <add>, %75, %cst_17 [1] : vector<8x32xf32> to vector<8xf32>
    %77 = vector.shape_cast %76 : vector<8xf32> to vector<8x1xf32>
    %c2_18 = arith.constant 2 : index
    %78 = memref.load %arg1[%c2_18] : memref<4xf32, #tpu.memory_space<smem>>
    %79 = vector.broadcast %78 : f32 to vector<8x1xf32>
    %80 = arith.mulf %77, %79 : vector<8x1xf32>
    %81 = vector.extract_strided_slice %3 {offsets = [0, 224], sizes = [8, 32], strides = [1, 1]} : vector<8x512xf32> to vector<8x32xf32>
    %cst_19 = arith.constant dense<0.000000e+00> : vector<8xf32>
    %82 = vector.multi_reduction <add>, %81, %cst_19 [1] : vector<8x32xf32> to vector<8xf32>
    %83 = vector.shape_cast %82 : vector<8xf32> to vector<8x1xf32>
    %c3_20 = arith.constant 3 : index
    %84 = memref.load %arg1[%c3_20] : memref<4xf32, #tpu.memory_space<smem>>
    %85 = vector.broadcast %84 : f32 to vector<8x1xf32>
    %86 = arith.mulf %83, %85 : vector<8x1xf32>
    %87 = arith.maximumf %68, %74 : vector<8x1xf32>
    %88 = arith.maximumf %87, %80 : vector<8x1xf32>
    %89 = arith.maximumf %88, %86 : vector<8x1xf32>
    %90 = arith.subf %68, %89 : vector<8x1xf32>
    %91 = math.exp %90 : vector<8x1xf32>
    %92 = arith.subf %74, %89 : vector<8x1xf32>
    %93 = math.exp %92 : vector<8x1xf32>
    %94 = arith.subf %80, %89 : vector<8x1xf32>
    %95 = math.exp %94 : vector<8x1xf32>
    %96 = arith.subf %86, %89 : vector<8x1xf32>
    %97 = math.exp %96 : vector<8x1xf32>
    %98 = arith.addf %91, %93 : vector<8x1xf32>
    %99 = arith.addf %98, %95 : vector<8x1xf32>
    %100 = arith.addf %99, %97 : vector<8x1xf32>
    %cst_21 = arith.constant 1.000000e+00 : f32
    %101 = vector.broadcast %cst_21 : f32 to vector<8x1xf32>
    %102 = arith.divf %101, %100 : vector<8x1xf32>
    %103 = arith.mulf %91, %102 : vector<8x1xf32>
    %c0_22 = arith.constant 0 : index
    %c128 = arith.constant 128 : index
    %104 = vector.load %arg3[%c0_22, %c128] : memref<8x512xf32, #tpu.memory_space<vmem>>, vector<8x32xf32>
    %105 = vector.broadcast %103 : vector<8x1xf32> to vector<8x32xf32>
    %106 = arith.mulf %105, %104 : vector<8x32xf32>
    %107 = arith.mulf %93, %102 : vector<8x1xf32>
    %c0_23 = arith.constant 0 : index
    %c160 = arith.constant 160 : index
    %108 = vector.load %arg3[%c0_23, %c160] : memref<8x512xf32, #tpu.memory_space<vmem>>, vector<8x32xf32>
    %109 = vector.broadcast %107 : vector<8x1xf32> to vector<8x32xf32>
    %110 = arith.mulf %109, %108 : vector<8x32xf32>
    %111 = arith.addf %106, %110 : vector<8x32xf32>
    %112 = arith.mulf %95, %102 : vector<8x1xf32>
    %c0_24 = arith.constant 0 : index
    %c192 = arith.constant 192 : index
    %113 = vector.load %arg3[%c0_24, %c192] : memref<8x512xf32, #tpu.memory_space<vmem>>, vector<8x32xf32>
    %114 = vector.broadcast %112 : vector<8x1xf32> to vector<8x32xf32>
    %115 = arith.mulf %114, %113 : vector<8x32xf32>
    %116 = arith.addf %111, %115 : vector<8x32xf32>
    %117 = arith.mulf %97, %102 : vector<8x1xf32>
    %c0_25 = arith.constant 0 : index
    %c224 = arith.constant 224 : index
    %118 = vector.load %arg3[%c0_25, %c224] : memref<8x512xf32, #tpu.memory_space<vmem>>, vector<8x32xf32>
    %119 = vector.broadcast %117 : vector<8x1xf32> to vector<8x32xf32>
    %120 = arith.mulf %119, %118 : vector<8x32xf32>
    %121 = arith.addf %116, %120 : vector<8x32xf32>
    %122 = vector.extract_strided_slice %3 {offsets = [0, 256], sizes = [8, 32], strides = [1, 1]} : vector<8x512xf32> to vector<8x32xf32>
    %cst_26 = arith.constant dense<0.000000e+00> : vector<8xf32>
    %123 = vector.multi_reduction <add>, %122, %cst_26 [1] : vector<8x32xf32> to vector<8xf32>
    %124 = vector.shape_cast %123 : vector<8xf32> to vector<8x1xf32>
    %c0_27 = arith.constant 0 : index
    %125 = memref.load %arg1[%c0_27] : memref<4xf32, #tpu.memory_space<smem>>
    %126 = vector.broadcast %125 : f32 to vector<8x1xf32>
    %127 = arith.mulf %124, %126 : vector<8x1xf32>
    %128 = vector.extract_strided_slice %3 {offsets = [0, 288], sizes = [8, 32], strides = [1, 1]} : vector<8x512xf32> to vector<8x32xf32>
    %cst_28 = arith.constant dense<0.000000e+00> : vector<8xf32>
    %129 = vector.multi_reduction <add>, %128, %cst_28 [1] : vector<8x32xf32> to vector<8xf32>
    %130 = vector.shape_cast %129 : vector<8xf32> to vector<8x1xf32>
    %c1_29 = arith.constant 1 : index
    %131 = memref.load %arg1[%c1_29] : memref<4xf32, #tpu.memory_space<smem>>
    %132 = vector.broadcast %131 : f32 to vector<8x1xf32>
    %133 = arith.mulf %130, %132 : vector<8x1xf32>
    %134 = vector.extract_strided_slice %3 {offsets = [0, 320], sizes = [8, 32], strides = [1, 1]} : vector<8x512xf32> to vector<8x32xf32>
    %cst_30 = arith.constant dense<0.000000e+00> : vector<8xf32>
    %135 = vector.multi_reduction <add>, %134, %cst_30 [1] : vector<8x32xf32> to vector<8xf32>
    %136 = vector.shape_cast %135 : vector<8xf32> to vector<8x1xf32>
    %c2_31 = arith.constant 2 : index
    %137 = memref.load %arg1[%c2_31] : memref<4xf32, #tpu.memory_space<smem>>
    %138 = vector.broadcast %137 : f32 to vector<8x1xf32>
    %139 = arith.mulf %136, %138 : vector<8x1xf32>
    %140 = vector.extract_strided_slice %3 {offsets = [0, 352], sizes = [8, 32], strides = [1, 1]} : vector<8x512xf32> to vector<8x32xf32>
    %cst_32 = arith.constant dense<0.000000e+00> : vector<8xf32>
    %141 = vector.multi_reduction <add>, %140, %cst_32 [1] : vector<8x32xf32> to vector<8xf32>
    %142 = vector.shape_cast %141 : vector<8xf32> to vector<8x1xf32>
    %c3_33 = arith.constant 3 : index
    %143 = memref.load %arg1[%c3_33] : memref<4xf32, #tpu.memory_space<smem>>
    %144 = vector.broadcast %143 : f32 to vector<8x1xf32>
    %145 = arith.mulf %142, %144 : vector<8x1xf32>
    %146 = arith.maximumf %127, %133 : vector<8x1xf32>
    %147 = arith.maximumf %146, %139 : vector<8x1xf32>
    %148 = arith.maximumf %147, %145 : vector<8x1xf32>
    %149 = arith.subf %127, %148 : vector<8x1xf32>
    %150 = math.exp %149 : vector<8x1xf32>
    %151 = arith.subf %133, %148 : vector<8x1xf32>
    %152 = math.exp %151 : vector<8x1xf32>
    %153 = arith.subf %139, %148 : vector<8x1xf32>
    %154 = math.exp %153 : vector<8x1xf32>
    %155 = arith.subf %145, %148 : vector<8x1xf32>
    %156 = math.exp %155 : vector<8x1xf32>
    %157 = arith.addf %150, %152 : vector<8x1xf32>
    %158 = arith.addf %157, %154 : vector<8x1xf32>
    %159 = arith.addf %158, %156 : vector<8x1xf32>
    %cst_34 = arith.constant 1.000000e+00 : f32
    %160 = vector.broadcast %cst_34 : f32 to vector<8x1xf32>
    %161 = arith.divf %160, %159 : vector<8x1xf32>
    %162 = arith.mulf %150, %161 : vector<8x1xf32>
    %c0_35 = arith.constant 0 : index
    %c256 = arith.constant 256 : index
    %163 = vector.load %arg3[%c0_35, %c256] : memref<8x512xf32, #tpu.memory_space<vmem>>, vector<8x32xf32>
    %164 = vector.broadcast %162 : vector<8x1xf32> to vector<8x32xf32>
    %165 = arith.mulf %164, %163 : vector<8x32xf32>
    %166 = arith.mulf %152, %161 : vector<8x1xf32>
    %c0_36 = arith.constant 0 : index
    %c288 = arith.constant 288 : index
    %167 = vector.load %arg3[%c0_36, %c288] : memref<8x512xf32, #tpu.memory_space<vmem>>, vector<8x32xf32>
    %168 = vector.broadcast %166 : vector<8x1xf32> to vector<8x32xf32>
    %169 = arith.mulf %168, %167 : vector<8x32xf32>
    %170 = arith.addf %165, %169 : vector<8x32xf32>
    %171 = arith.mulf %154, %161 : vector<8x1xf32>
    %c0_37 = arith.constant 0 : index
    %c320 = arith.constant 320 : index
    %172 = vector.load %arg3[%c0_37, %c320] : memref<8x512xf32, #tpu.memory_space<vmem>>, vector<8x32xf32>
    %173 = vector.broadcast %171 : vector<8x1xf32> to vector<8x32xf32>
    %174 = arith.mulf %173, %172 : vector<8x32xf32>
    %175 = arith.addf %170, %174 : vector<8x32xf32>
    %176 = arith.mulf %156, %161 : vector<8x1xf32>
    %c0_38 = arith.constant 0 : index
    %c352 = arith.constant 352 : index
    %177 = vector.load %arg3[%c0_38, %c352] : memref<8x512xf32, #tpu.memory_space<vmem>>, vector<8x32xf32>
    %178 = vector.broadcast %176 : vector<8x1xf32> to vector<8x32xf32>
    %179 = arith.mulf %178, %177 : vector<8x32xf32>
    %180 = arith.addf %175, %179 : vector<8x32xf32>
    %181 = vector.extract_strided_slice %3 {offsets = [0, 384], sizes = [8, 32], strides = [1, 1]} : vector<8x512xf32> to vector<8x32xf32>
    %cst_39 = arith.constant dense<0.000000e+00> : vector<8xf32>
    %182 = vector.multi_reduction <add>, %181, %cst_39 [1] : vector<8x32xf32> to vector<8xf32>
    %183 = vector.shape_cast %182 : vector<8xf32> to vector<8x1xf32>
    %c0_40 = arith.constant 0 : index
    %184 = memref.load %arg1[%c0_40] : memref<4xf32, #tpu.memory_space<smem>>
    %185 = vector.broadcast %184 : f32 to vector<8x1xf32>
    %186 = arith.mulf %183, %185 : vector<8x1xf32>
    %187 = vector.extract_strided_slice %3 {offsets = [0, 416], sizes = [8, 32], strides = [1, 1]} : vector<8x512xf32> to vector<8x32xf32>
    %cst_41 = arith.constant dense<0.000000e+00> : vector<8xf32>
    %188 = vector.multi_reduction <add>, %187, %cst_41 [1] : vector<8x32xf32> to vector<8xf32>
    %189 = vector.shape_cast %188 : vector<8xf32> to vector<8x1xf32>
    %c1_42 = arith.constant 1 : index
    %190 = memref.load %arg1[%c1_42] : memref<4xf32, #tpu.memory_space<smem>>
    %191 = vector.broadcast %190 : f32 to vector<8x1xf32>
    %192 = arith.mulf %189, %191 : vector<8x1xf32>
    %193 = vector.extract_strided_slice %3 {offsets = [0, 448], sizes = [8, 32], strides = [1, 1]} : vector<8x512xf32> to vector<8x32xf32>
    %cst_43 = arith.constant dense<0.000000e+00> : vector<8xf32>
    %194 = vector.multi_reduction <add>, %193, %cst_43 [1] : vector<8x32xf32> to vector<8xf32>
    %195 = vector.shape_cast %194 : vector<8xf32> to vector<8x1xf32>
    %c2_44 = arith.constant 2 : index
    %196 = memref.load %arg1[%c2_44] : memref<4xf32, #tpu.memory_space<smem>>
    %197 = vector.broadcast %196 : f32 to vector<8x1xf32>
    %198 = arith.mulf %195, %197 : vector<8x1xf32>
    %199 = vector.extract_strided_slice %3 {offsets = [0, 480], sizes = [8, 32], strides = [1, 1]} : vector<8x512xf32> to vector<8x32xf32>
    %cst_45 = arith.constant dense<0.000000e+00> : vector<8xf32>
    %200 = vector.multi_reduction <add>, %199, %cst_45 [1] : vector<8x32xf32> to vector<8xf32>
    %201 = vector.shape_cast %200 : vector<8xf32> to vector<8x1xf32>
    %c3_46 = arith.constant 3 : index
    %202 = memref.load %arg1[%c3_46] : memref<4xf32, #tpu.memory_space<smem>>
    %203 = vector.broadcast %202 : f32 to vector<8x1xf32>
    %204 = arith.mulf %201, %203 : vector<8x1xf32>
    %205 = arith.maximumf %186, %192 : vector<8x1xf32>
    %206 = arith.maximumf %205, %198 : vector<8x1xf32>
    %207 = arith.maximumf %206, %204 : vector<8x1xf32>
    %208 = arith.subf %186, %207 : vector<8x1xf32>
    %209 = math.exp %208 : vector<8x1xf32>
    %210 = arith.subf %192, %207 : vector<8x1xf32>
    %211 = math.exp %210 : vector<8x1xf32>
    %212 = arith.subf %198, %207 : vector<8x1xf32>
    %213 = math.exp %212 : vector<8x1xf32>
    %214 = arith.subf %204, %207 : vector<8x1xf32>
    %215 = math.exp %214 : vector<8x1xf32>
    %216 = arith.addf %209, %211 : vector<8x1xf32>
    %217 = arith.addf %216, %213 : vector<8x1xf32>
    %218 = arith.addf %217, %215 : vector<8x1xf32>
    %cst_47 = arith.constant 1.000000e+00 : f32
    %219 = vector.broadcast %cst_47 : f32 to vector<8x1xf32>
    %220 = arith.divf %219, %218 : vector<8x1xf32>
    %221 = arith.mulf %209, %220 : vector<8x1xf32>
    %c0_48 = arith.constant 0 : index
    %c384 = arith.constant 384 : index
    %222 = vector.load %arg3[%c0_48, %c384] : memref<8x512xf32, #tpu.memory_space<vmem>>, vector<8x32xf32>
    %223 = vector.broadcast %221 : vector<8x1xf32> to vector<8x32xf32>
    %224 = arith.mulf %223, %222 : vector<8x32xf32>
    %225 = arith.mulf %211, %220 : vector<8x1xf32>
    %c0_49 = arith.constant 0 : index
    %c416 = arith.constant 416 : index
    %226 = vector.load %arg3[%c0_49, %c416] : memref<8x512xf32, #tpu.memory_space<vmem>>, vector<8x32xf32>
    %227 = vector.broadcast %225 : vector<8x1xf32> to vector<8x32xf32>
    %228 = arith.mulf %227, %226 : vector<8x32xf32>
    %229 = arith.addf %224, %228 : vector<8x32xf32>
    %230 = arith.mulf %213, %220 : vector<8x1xf32>
    %c0_50 = arith.constant 0 : index
    %c448 = arith.constant 448 : index
    %231 = vector.load %arg3[%c0_50, %c448] : memref<8x512xf32, #tpu.memory_space<vmem>>, vector<8x32xf32>
    %232 = vector.broadcast %230 : vector<8x1xf32> to vector<8x32xf32>
    %233 = arith.mulf %232, %231 : vector<8x32xf32>
    %234 = arith.addf %229, %233 : vector<8x32xf32>
    %235 = arith.mulf %215, %220 : vector<8x1xf32>
    %c0_51 = arith.constant 0 : index
    %c480 = arith.constant 480 : index
    %236 = vector.load %arg3[%c0_51, %c480] : memref<8x512xf32, #tpu.memory_space<vmem>>, vector<8x32xf32>
    %237 = vector.broadcast %235 : vector<8x1xf32> to vector<8x32xf32>
    %238 = arith.mulf %237, %236 : vector<8x32xf32>
    %239 = arith.addf %234, %238 : vector<8x32xf32>
    %240 = tpu.concatenate %62, %121, %180, %239 in 1 : vector<8x32xf32>, vector<8x32xf32>, vector<8x32xf32>, vector<8x32xf32> -> vector<8x128xf32>
    %c0_52 = arith.constant 0 : index
    %c0_53 = arith.constant 0 : index
    %241 = vector.load %arg4[%c0_52, %c0_53] : memref<8x128xf32, #tpu.memory_space<vmem>>, vector<8x128xf32>
    tpu.vector_store %arg4[%c0_52, %c0_53], %240 {strides = array<i32>} : memref<8x128xf32, #tpu.memory_space<vmem>>, vector<8x128xf32>,
    return
  }
  func.func @transform_0(%arg0: i32) -> i32 {
    %c0_i32 = arith.constant 0 : i32
    %c0_i32_0 = arith.constant 0 : i32
    return %c0_i32 : i32
  }
  func.func @transform_1(%arg0: i32) -> (i32, i32) {
    %c0_i32 = arith.constant 0 : i32
    %c0_i32_0 = arith.constant 0 : i32
    %c0_i32_1 = arith.constant 0 : i32
    return %c0_i32, %c0_i32_0 : i32, i32
  }
  func.func @transform_2(%arg0: i32) -> (i32, i32) {
    %c0_i32 = arith.constant 0 : i32
    %c0_i32_0 = arith.constant 0 : i32
    return %arg0, %c0_i32 : i32, i32
  }
  func.func @transform_3(%arg0: i32) -> (i32, i32) {
    %c0_i32 = arith.constant 0 : i32
    %c0_i32_0 = arith.constant 0 : i32
    return %arg0, %c0_i32 : i32, i32
  }
}

</mosaic_0001>

<llo_original>
// kernel: tpu_custom_call.1
$region0: #{tpu_custom_call.1}
  #allocation0 [shape = 'u32[]', space=smem, size = 0x4, offset = 0x4, fixed_abs, tag = 'smem constant byte address 0x4 - core index']
  #allocation1 [shape = 'u32[144,128]{1,0:T(1,128)}', space=vmem, size = 0x12000, scoped, tag = 'internal scratch']
  %s0 = inlined_call_operand.hbm [shape: f32[4], index: 0, kind: input, shape index: {}]
  %s1 = inlined_call_operand.hbm [shape: f32[1,512], index: 1, kind: input, shape index: {}]
  %s2 = inlined_call_operand.hbm [shape: f32[8,512], index: 2, kind: input, shape index: {}]
  %s3 = inlined_call_operand.hbm [shape: f32[8,128], index: 3, kind: output, shape index: {}]
  %s4 = sld [smem:[#allocation0]]
  $region34: #{tpu_custom_call.1} parent=0
    _
  %s6 = ssub.s32 1, %s4
  %s7 = scalar_select 0, %s6, %s4
  $region1: #{tpu_custom_call.1} parent=0
    #allocation2 [shape = 'u8[512]{0}', space=smem, size = 0x200, scoped, tag = 'input window, operand 0, single buffered']
    #allocation3 [shape = 's32[1]{0}', space=sflag, size = 0x4, scoped, tag = 'scoped memory for tpu_custom_call.1']
    #allocation4 [shape = 's32[1]{0}', space=sflag, size = 0x4, scoped, tag = 'scoped memory for tpu_custom_call.1']
    #allocation5 [shape = 's32[1]{0}', space=sflag, size = 0x4, scoped, tag = 'scoped memory for tpu_custom_call.1']
    #allocation6 [shape = 'u8[2048]{0}', space=vmem, size = 0x800, scoped, tag = 'input window, operand 1, single buffered']
    #allocation7 [shape = 'u8[16384]{0}', space=vmem, size = 0x4000, scoped, tag = 'input window, operand 2, single buffered']
    #allocation8 [shape = 's32[1]{0}', space=sflag, size = 0x4, scoped, tag = 'scoped memory for tpu_custom_call.1']
    #allocation9 [shape = 'u8[4096]{0}', space=vmem, size = 0x1000, scoped, tag = 'output window, operand 0, single buffered']
    %8 = vsyncpa [#allocation5], 0
    %9 = vsyncpa [#allocation3], 0
    %10 = vsyncpa [#allocation8], 0
    %11 = vsyncpa [#allocation4], 0
    // Predicated region
    $region2: #{tpu_custom_call.1} parent=1 // pred_check
      _
    $region3: #{tpu_custom_call.1} parent=1 // pred_check_branch
      %13 = sbr.rel (0) target = $region5
    $region4: #{tpu_custom_call.1} parent=1 // pred_region
      %s15 = ssub.s32 16, 16
      %16 = vsyncadd [#allocation5], %s15
      %19 = dma.hbm_to_smem %s0, 16, [#allocation2], [#allocation5]
    $region5: #{tpu_custom_call.1} parent=1 // pred_fallthru
      _
    // Predicated region
    $region6: #{tpu_custom_call.1} parent=1 // pred_check
      _
    $region7: #{tpu_custom_call.1} parent=1 // pred_check_branch
      %21 = sbr.rel (0) target = $region9
    $region8: #{tpu_custom_call.1} parent=1 // pred_region
      %s23 = ssub.s32 64, 64
      %24 = vsyncadd [#allocation3], %s23
      %s26 = sshll.u32 [#allocation6], 4
      %s27 = int_to_ptr.vmem [resolvable:$true] %s26
      %29 = dma.hbm_to_vmem [thread:$0]  %s1, 64, %s27, [#allocation3]
    $region9: #{tpu_custom_call.1} parent=1 // pred_fallthru
      _
    // Predicated region
    $region10: #{tpu_custom_call.1} parent=1 // pred_check
      _
    $region11: #{tpu_custom_call.1} parent=1 // pred_check_branch
      %31 = sbr.rel (0) target = $region13
    $region12: #{tpu_custom_call.1} parent=1 // pred_region
      %s33 = ssub.s32 512, 512
      %34 = vsyncadd [#allocation8], %s33
      %s36 = sshll.u32 [#allocation7], 4
      %s37 = int_to_ptr.vmem [resolvable:$true] %s36
      %39 = dma.hbm_to_vmem [thread:$0]  %s2, 512, %s37, [#allocation8]
    $region13: #{tpu_custom_call.1} parent=1 // pred_fallthru
      _
    // Predicated region
    $region14: #{tpu_custom_call.1} parent=1 // pred_check
      _
    $region15: #{tpu_custom_call.1} parent=1 // pred_check_branch
      %41 = sbr.rel (0) target = $region17
    $region16: #{tpu_custom_call.1} parent=1 // pred_region
      %42 = dma.done [#allocation5], 16
    $region17: #{tpu_custom_call.1} parent=1 // pred_fallthru
      _
    // Predicated region
    $region18: #{tpu_custom_call.1} parent=1 // pred_check
      _
    $region19: #{tpu_custom_call.1} parent=1 // pred_check_branch
      %44 = sbr.rel (0) target = $region21
    $region20: #{tpu_custom_call.1} parent=1 // pred_region
      %45 = dma.done [#allocation3], 64
    $region21: #{tpu_custom_call.1} parent=1 // pred_fallthru
      _
    // Predicated region
    $region22: #{tpu_custom_call.1} parent=1 // pred_check
      _
    $region23: #{tpu_custom_call.1} parent=1 // pred_check_branch
      %47 = sbr.rel (0) target = $region25
    $region24: #{tpu_custom_call.1} parent=1 // pred_region
      %48 = dma.done [#allocation8], 512
    $region25: #{tpu_custom_call.1} parent=1 // pred_fallthru
      _
    %49 = sfence
    %v50 = vld [vmem:[#allocation7] sm:$0xff]
    %v51 = vld [vmem:[#allocation7 + $0x8] sm:$0xff]
    %v52 = vld [vmem:[#allocation7 + $0x10] sm:$0xff]
    %v53 = vld [vmem:[#allocation7 + $0x18] sm:$0xff]
    %v54 = vld [vmem:[#allocation6] sm:$0xf]
    %v56 = vlaneseq
    %v57 = vshrl.u32 %v56, 7
    %v58 = vsub.s32 0, %v57
    %v59 = vrot.slane %v54, %v58
    %v60 = vlaneseq
    %v61 = vshrl.u32 %v60, 7
    %v62 = vsub.s32 1, %v61
    %v63 = vrot.slane %v54, %v62
    %v64 = vlaneseq
    %v65 = vshrl.u32 %v64, 7
    %v66 = vsub.s32 2, %v65
    %v67 = vrot.slane %v54, %v66
    %v68 = vlaneseq
    %v69 = vshrl.u32 %v68, 7
    %v70 = vsub.s32 3, %v69
    %v71 = vrot.slane %v54, %v70
    %v76 = vmul.f32 %v50, %v59
    %v77 = vmul.f32 %v51, %v63
    %v78 = vmul.f32 %v52, %v67
    %v79 = vmul.f32 %v53, %v71
    %vm80 = vcmask 261120
    %v81 = vsel %vm80, %v76, 0.0
    %82 = vadd.xlane.f32.xlu0 %v81
    %v83 = vpop.xlane.xlu0 %82
    %s84 = sld [smem:[#allocation2]]
    %v85 = vstv %s84
    %v86 = vmul.f32 %v83, %v85
    %88 = vrot.lane.b32.xlu0 %v76, 96
    %v89 = vpop.permute.xlu0 %88
    %v91 = vsel %vm80, %v89, 0.0
    %92 = vadd.xlane.f32.xlu0 %v91
    %v93 = vpop.xlane.xlu0 %92
    %s94 = sld [smem:[#allocation2 + $0x1]]
    %v95 = vstv %s94
    %v96 = vmul.f32 %v93, %v95
    %97 = vrot.lane.b32.xlu0 %v76, 64
    %v98 = vpop.permute.xlu0 %97
    %v100 = vsel %vm80, %v98, 0.0
    %101 = vadd.xlane.f32.xlu0 %v100
    %v102 = vpop.xlane.xlu0 %101
    %s103 = sld [smem:[#allocation2 + $0x2]]
    %v104 = vstv %s103
    %v105 = vmul.f32 %v102, %v104
    %106 = vrot.lane.b32.xlu0 %v76, 32
    %v107 = vpop.permute.xlu0 %106
    %v109 = vsel %vm80, %v107, 0.0
    %110 = vadd.xlane.f32.xlu0 %v109
    %v111 = vpop.xlane.xlu0 %110
    %s112 = sld [smem:[#allocation2 + $0x3]]
    %v113 = vstv %s112
    %v114 = vmul.f32 %v111, %v113
    %v115 = vmax.f32 %v86, %v96
    %v116 = vmax.f32 %v115, %v105
    %v117 = vmax.f32 %v116, %v114
    %v118 = vsub.f32 %v86, %v117
    %v119 = vmul.f32 %v118, 1.442695
    %v120 = vpow.pop %v119
    %v121 = vsub.f32 %v96, %v117
    %v122 = vmul.f32 %v121, 1.442695
    %v123 = vpow.pop %v122
    %v124 = vsub.f32 %v105, %v117
    %v125 = vmul.f32 %v124, 1.442695
    %v126 = vpow.pop %v125
    %v127 = vsub.f32 %v114, %v117
    %v128 = vmul.f32 %v127, 1.442695
    %v129 = vpow.pop %v128
    %v130 = vadd.f32 %v120, %v123
    %v131 = vadd.f32 %v130, %v126
    %v132 = vadd.f32 %v131, %v129
    %v133 = vrcp.pop %v132
    %v134 = vmul.f32 1.0, %v133
    %v135 = vmul.f32 %v120, %v134
    %v136 = vld [vmem:[#allocation7] sm:$0xff]
    %v137 = vmul.f32 %v135, %v136
    %v138 = vmul.f32 %v123, %v134
    %v139 = vmul.f32 %v138, %v136
    %141 = vrot.lane.b32.xlu0 %v139, 96
    %v142 = vpop.permute.xlu0 %141
    %v144 = vadd.f32 %v137, %v142
    %v145 = vmul.f32 %v126, %v134
    %v146 = vmul.f32 %v145, %v136
    %148 = vrot.lane.b32.xlu0 %v146, 64
    %v149 = vpop.permute.xlu0 %148
    %v151 = vadd.f32 %v144, %v149
    %v152 = vmul.f32 %v129, %v134
    %v153 = vmul.f32 %v152, %v136
    %155 = vrot.lane.b32.xlu0 %v153, 32
    %v156 = vpop.permute.xlu0 %155
    %v158 = vadd.f32 %v151, %v156
    %v159 = vsel %vm80, %v77, 0.0
    %160 = vadd.xlane.f32.xlu0 %v159
    %v161 = vpop.xlane.xlu0 %160
    %v162 = vmul.f32 %v161, %v85
    %164 = vrot.lane.b32.xlu0 %v77, 96
    %v165 = vpop.permute.xlu0 %164
    %v167 = vsel %vm80, %v165, 0.0
    %168 = vadd.xlane.f32.xlu0 %v167
    %v169 = vpop.xlane.xlu0 %168
    %v170 = vmul.f32 %v169, %v95
    %171 = vrot.lane.b32.xlu0 %v77, 64
    %v172 = vpop.permute.xlu0 %171
    %v174 = vsel %vm80, %v172, 0.0
    %175 = vadd.xlane.f32.xlu0 %v174
    %v176 = vpop.xlane.xlu0 %175
    %v177 = vmul.f32 %v176, %v104
    %178 = vrot.lane.b32.xlu0 %v77, 32
    %v179 = vpop.permute.xlu0 %178
    %v181 = vsel %vm80, %v179, 0.0
    %182 = vadd.xlane.f32.xlu0 %v181
    %v183 = vpop.xlane.xlu0 %182
    %v184 = vmul.f32 %v183, %v113
    %v185 = vmax.f32 %v162, %v170
    %v186 = vmax.f32 %v185, %v177
    %v187 = vmax.f32 %v186, %v184
    %v188 = vsub.f32 %v162, %v187
    %v189 = vmul.f32 %v188, 1.442695
    %v190 = vpow.pop %v189
    %v191 = vsub.f32 %v170, %v187
    %v192 = vmul.f32 %v191, 1.442695
    %v193 = vpow.pop %v192
    %v194 = vsub.f32 %v177, %v187
    %v195 = vmul.f32 %v194, 1.442695
    %v196 = vpow.pop %v195
    %v197 = vsub.f32 %v184, %v187
    %v198 = vmul.f32 %v197, 1.442695
    %v199 = vpow.pop %v198
    %v200 = vadd.f32 %v190, %v193
    %v201 = vadd.f32 %v200, %v196
    %v202 = vadd.f32 %v201, %v199
    %v203 = vrcp.pop %v202
    %v204 = vmul.f32 1.0, %v203
    %v205 = vmul.f32 %v190, %v204
    %v206 = vld [vmem:[#allocation7 + $0x8] sm:$0xff]
    %v207 = vmul.f32 %v205, %v206
    %v208 = vmul.f32 %v193, %v204
    %v209 = vmul.f32 %v208, %v206
    %211 = vrot.lane.b32.xlu0 %v209, 96
    %v212 = vpop.permute.xlu0 %211
    %v214 = vadd.f32 %v207, %v212
    %v215 = vmul.f32 %v196, %v204
    %v216 = vmul.f32 %v215, %v206
    %218 = vrot.lane.b32.xlu0 %v216, 64
    %v219 = vpop.permute.xlu0 %218
    %v221 = vadd.f32 %v214, %v219
    %v222 = vmul.f32 %v199, %v204
    %v223 = vmul.f32 %v222, %v206
    %225 = vrot.lane.b32.xlu0 %v223, 32
    %v226 = vpop.permute.xlu0 %225
    %v228 = vadd.f32 %v221, %v226
    %v229 = vsel %vm80, %v78, 0.0
    %230 = vadd.xlane.f32.xlu0 %v229
    %v231 = vpop.xlane.xlu0 %230
    %v232 = vmul.f32 %v231, %v85
    %234 = vrot.lane.b32.xlu0 %v78, 96
    %v235 = vpop.permute.xlu0 %234
    %v237 = vsel %vm80, %v235, 0.0
    %238 = vadd.xlane.f32.xlu0 %v237
    %v239 = vpop.xlane.xlu0 %238
    %v240 = vmul.f32 %v239, %v95
    %241 = vrot.lane.b32.xlu0 %v78, 64
    %v242 = vpop.permute.xlu0 %241
    %v244 = vsel %vm80, %v242, 0.0
    %245 = vadd.xlane.f32.xlu0 %v244
    %v246 = vpop.xlane.xlu0 %245
    %v247 = vmul.f32 %v246, %v104
    %248 = vrot.lane.b32.xlu0 %v78, 32
    %v249 = vpop.permute.xlu0 %248
    %v251 = vsel %vm80, %v249, 0.0
    %252 = vadd.xlane.f32.xlu0 %v251
    %v253 = vpop.xlane.xlu0 %252
    %v254 = vmul.f32 %v253, %v113
    %v255 = vmax.f32 %v232, %v240
    %v256 = vmax.f32 %v255, %v247
    %v257 = vmax.f32 %v256, %v254
    %v258 = vsub.f32 %v232, %v257
    %v259 = vmul.f32 %v258, 1.442695
    %v260 = vpow.pop %v259
    %v261 = vsub.f32 %v240, %v257
    %v262 = vmul.f32 %v261, 1.442695
    %v263 = vpow.pop %v262
    %v264 = vsub.f32 %v247, %v257
    %v265 = vmul.f32 %v264, 1.442695
    %v266 = vpow.pop %v265
    %v267 = vsub.f32 %v254, %v257
    %v268 = vmul.f32 %v267, 1.442695
    %v269 = vpow.pop %v268
    %v270 = vadd.f32 %v260, %v263
    %v271 = vadd.f32 %v270, %v266
    %v272 = vadd.f32 %v271, %v269
    %v273 = vrcp.pop %v272
    %v274 = vmul.f32 1.0, %v273
    %v275 = vmul.f32 %v260, %v274
    %v276 = vld [vmem:[#allocation7 + $0x10] sm:$0xff]
    %v277 = vmul.f32 %v275, %v276
    %v278 = vmul.f32 %v263, %v274
    %v279 = vmul.f32 %v278, %v276
    %281 = vrot.lane.b32.xlu0 %v279, 96
    %v282 = vpop.permute.xlu0 %281
    %v284 = vadd.f32 %v277, %v282
    %v285 = vmul.f32 %v266, %v274
    %v286 = vmul.f32 %v285, %v276
    %288 = vrot.lane.b32.xlu0 %v286, 64
    %v289 = vpop.permute.xlu0 %288
    %v291 = vadd.f32 %v284, %v289
    %v292 = vmul.f32 %v269, %v274
    %v293 = vmul.f32 %v292, %v276
    %295 = vrot.lane.b32.xlu0 %v293, 32
    %v296 = vpop.permute.xlu0 %295
    %v298 = vadd.f32 %v291, %v296
    %v299 = vsel %vm80, %v79, 0.0
    %300 = vadd.xlane.f32.xlu0 %v299
    %v301 = vpop.xlane.xlu0 %300
    %v302 = vmul.f32 %v301, %v85
    %304 = vrot.lane.b32.xlu0 %v79, 96
    %v305 = vpop.permute.xlu0 %304
    %v307 = vsel %vm80, %v305, 0.0
    %308 = vadd.xlane.f32.xlu0 %v307
    %v309 = vpop.xlane.xlu0 %308
    %v310 = vmul.f32 %v309, %v95
    %311 = vrot.lane.b32.xlu0 %v79, 64
    %v312 = vpop.permute.xlu0 %311
    %v314 = vsel %vm80, %v312, 0.0
    %315 = vadd.xlane.f32.xlu0 %v314
    %v316 = vpop.xlane.xlu0 %315
    %v317 = vmul.f32 %v316, %v104
    %318 = vrot.lane.b32.xlu0 %v79, 32
    %v319 = vpop.permute.xlu0 %318
    %v321 = vsel %vm80, %v319, 0.0
    %322 = vadd.xlane.f32.xlu0 %v321
    %v323 = vpop.xlane.xlu0 %322
    %v324 = vmul.f32 %v323, %v113
    %v325 = vmax.f32 %v302, %v310
    %v326 = vmax.f32 %v325, %v317
    %v327 = vmax.f32 %v326, %v324
    %v328 = vsub.f32 %v302, %v327
    %v329 = vmul.f32 %v328, 1.442695
    %v330 = vpow.pop %v329
    %v331 = vsub.f32 %v310, %v327
    %v332 = vmul.f32 %v331, 1.442695
    %v333 = vpow.pop %v332
    %v334 = vsub.f32 %v317, %v327
    %v335 = vmul.f32 %v334, 1.442695
    %v336 = vpow.pop %v335
    %v337 = vsub.f32 %v324, %v327
    %v338 = vmul.f32 %v337, 1.442695
    %v339 = vpow.pop %v338
    %v340 = vadd.f32 %v330, %v333
    %v341 = vadd.f32 %v340, %v336
    %v342 = vadd.f32 %v341, %v339
    %v343 = vrcp.pop %v342
    %v344 = vmul.f32 1.0, %v343
    %v345 = vmul.f32 %v330, %v344
    %v346 = vmul.f32 %v345, %v53
    %v347 = vmul.f32 %v333, %v344
    %v348 = vmul.f32 %v347, %v53
    %350 = vrot.lane.b32.xlu0 %v348, 96
    %v351 = vpop.permute.xlu0 %350
    %v353 = vadd.f32 %v346, %v351
    %v354 = vmul.f32 %v336, %v344
    %v355 = vmul.f32 %v354, %v53
    %357 = vrot.lane.b32.xlu0 %v355, 64
    %v358 = vpop.permute.xlu0 %357
    %v360 = vadd.f32 %v353, %v358
    %v361 = vmul.f32 %v339, %v344
    %v362 = vmul.f32 %v361, %v53
    %364 = vrot.lane.b32.xlu0 %v362, 32
    %v365 = vpop.permute.xlu0 %364
    %v367 = vadd.f32 %v360, %v365
    %369 = vrot.lane.b32.xlu0 %v228, 32
    %v370 = vpop.permute.xlu0 %369
    %373 = vrot.lane.b32.xlu0 %v298, 64
    %v374 = vpop.permute.xlu0 %373
    %377 = vrot.lane.b32.xlu0 %v367, 96
    %v378 = vpop.permute.xlu0 %377
    %v380 = vsel %vm80, %v158, %v370
    %vm381 = vcmask 523264
    %v382 = vsel %vm381, %v380, %v374
    %vm383 = vcmask 785408
    %v384 = vsel %vm383, %v382, %v378
    %385 = vst [vmem:[#allocation9] sm:$0xff] %v384
    // Predicated region
    $region26: #{tpu_custom_call.1} parent=1 // pred_check
      _
    $region27: #{tpu_custom_call.1} parent=1 // pred_check_branch
      %387 = sbr.rel (0) target = $region29
    $region28: #{tpu_custom_call.1} parent=1 // pred_region
      %s389 = ssub.s32 128, 128
      %390 = vsyncadd [#allocation4], %s389
      %s392 = sshll.u32 [#allocation9], 4
      %s393 = int_to_ptr.vmem [resolvable:$true] %s392
      %395 = dma.vmem_to_hbm [thread:$0]  %s393, 128, %s3, [#allocation4]
    $region29: #{tpu_custom_call.1} parent=1 // pred_fallthru
      _
    // Predicated region
    $region30: #{tpu_custom_call.1} parent=1 // pred_check
      _
    $region31: #{tpu_custom_call.1} parent=1 // pred_check_branch
      %397 = sbr.rel (0) target = $region33
    $region32: #{tpu_custom_call.1} parent=1 // pred_region
      %398 = dma.done [#allocation4], 128
    $region33: #{tpu_custom_call.1} parent=1 // pred_fallthru
      _
    %399 = vsyncpa [#allocation3], 1
    %400 = vsyncpa [#allocation8], 1
    %401 = vsyncpa [#allocation4], 1
    %402 = vsyncpa [#allocation5], 1

</llo_original>
